<compile_context>
chip_gen: v7x
topology: tpu7x:2x2x1
jax: 0.10.0
libtpu: 0.0.40
codegen_flags: <defaults>
</compile_context>

<pallas_src>
import math
import jax
import jax.numpy as jnp
from jax.experimental import pallas as pl
from jax.experimental.pallas import tpu as pltpu


# L-tile width: multiple of 128. 8192 keeps double-buffered x (2 MiB/buf) +
# out (~0.8 MiB/buf) well inside the default scoped-VMEM limit on every TPU
# generation (16 MiB v5e, 32 MiB v6e/v7x, and far under v7x's 64 MiB physical
# VMEM) while being wide enough (>=512) to sit near the HBM roofline.
_TL_MAX = 8192
# Whole-problem byte budget below which we skip L-tiling and run a single
# fused grid step (per-grid-step overhead ~0.35us dominates tiny problems).
_FUSED_BYTES = 1 << 20


def _final_head_tiled_kernel(x_ref, w_ref, b_ref, o_ref):
    # x_ref: (C_in, TL)  w_ref: (C_out, C_in)  b_ref: (C_out, 1)  o_ref: (C_out, TL)
    out = jnp.dot(w_ref[...], x_ref[...], preferred_element_type=jnp.float32)
    o_ref[...] = (out + b_ref[...]).astype(o_ref.dtype)


def _final_head_fused_kernel(x_ref, w_ref, b_ref, o_ref):
    # Tiny-shape path: x_ref (B, C_in, L), o_ref (B, C_out, L); B is tiny here.
    w = w_ref[...]
    b = b_ref[...]
    for n in range(x_ref.shape[0]):  # static unroll over the small batch
        out = jnp.dot(w, x_ref[n], preferred_element_type=jnp.float32)
        o_ref[n] = (out + b).astype(o_ref.dtype)


def final_head_forward(x, weight, bias, *, tile_l=None, force_tiled=False):
    """x: (B, 64, L) float; weight: (num_classes, 64); bias: (num_classes,)."""
    B, C_in, L = x.shape
    C_out = weight.shape[0]
    bias2d = bias.reshape(C_out, 1)

    total_bytes = B * (C_in + C_out) * L * x.dtype.itemsize
    if not force_tiled and total_bytes <= _FUSED_BYTES:
        # Tiny-shape path: one grid step, blocks == full array extents (so no
        # (8,128) divisibility requirement and no per-step grid overhead).
        return pl.pallas_call(
            _final_head_fused_kernel,
            out_shape=jax.ShapeDtypeStruct((B, C_out, L), x.dtype),
            grid_spec=pltpu.PrefetchScalarGridSpec(
                num_scalar_prefetch=0,
                grid=(1,),
                in_specs=[
                    pl.BlockSpec((B, C_in, L), lambda i: (0, 0, 0)),
                    pl.BlockSpec((C_out, C_in), lambda i: (0, 0)),
                    pl.BlockSpec((C_out, 1), lambda i: (0, 0)),
                ],
                out_specs=pl.BlockSpec((B, C_out, L), lambda i: (0, 0, 0)),
            ),
            compiler_params=pltpu.CompilerParams(
                dimension_semantics=("arbitrary",)),
        )(x, weight, bias2d)

    # Production path: tile the points axis so DMA pipelines against compute
    # and VMEM stays bounded regardless of L (ScanNet point counts ~1e4-1e5).
    if tile_l is None:
        tile_l = min(_TL_MAX, ((L + 127) // 128) * 128)
    n_l = pl.cdiv(L, tile_l)
    # Note: if L is not a multiple of tile_l, the ragged last block is safe:
    # each output column depends only on its own input column, so any
    # out-of-bounds input garbage only feeds out-of-bounds output columns,
    # whose writes Pallas drops.

    return pl.pallas_call(
        _final_head_tiled_kernel,
        out_shape=jax.ShapeDtypeStruct((B, C_out, L), x.dtype),
        grid_spec=pltpu.PrefetchScalarGridSpec(
            num_scalar_prefetch=0,
            grid=(B, n_l),  # no reduction axis: the C_in contraction is in-kernel
            in_specs=[
                pl.BlockSpec((None, C_in, tile_l), lambda n, l: (n, 0, l)),
                # weight/bias use constant index_maps -> stay VMEM-resident
                # across the whole grid (no re-DMA).
                pl.BlockSpec((C_out, C_in), lambda n, l: (0, 0)),
                pl.BlockSpec((C_out, 1), lambda n, l: (0, 0)),
            ],
            out_specs=pl.BlockSpec((None, C_out, tile_l), lambda n, l: (n, 0, l)),
        ),
        compiler_params=pltpu.CompilerParams(
            # Both axes are independent, so let megacore (v7x: 2 TCs) shard
            # over L tiles even when B is 1 or odd.
            dimension_semantics=("parallel", "parallel")),
    )(x, weight, bias2d)


if __name__ == "__main__":
    num_classes = 21
    C_in = 64  # fixed by the module: Conv1d(64, num_classes, 1)

    key = jax.random.PRNGKey(0)
    kx, kw, kb, kx2 = jax.random.split(key, 4)

    # Deterministic synthetic params, mimicking PyTorch Conv1d default init range.
    bound = 1.0 / math.sqrt(C_in)
    weight = jax.random.uniform(kw, (num_classes, C_in), jnp.float32, -bound, bound)
    bias = jax.random.uniform(kb, (num_classes,), jnp.float32, -bound, bound)

    def reference(x):
        return jnp.einsum("oc,bcl->bol", weight, x) + bias[None, :, None]

    # Small shape -> fused single-block path.
    B, L = 2, 128
    x = jax.random.normal(kx, (B, C_in, L), jnp.float32)
    out = jax.block_until_ready(final_head_forward(x, weight, bias))
    assert out.shape == (B, num_classes, L)
    assert jnp.allclose(out, reference(x), atol=1e-5, rtol=1e-5)

    # Slightly larger shape forced through the tiled (production) path so the
    # L-tiled grid is exercised too.
    B2, L2 = 2, 384
    x2 = jax.random.normal(kx2, (B2, C_in, L2), jnp.float32)
    out2 = jax.block_until_ready(
        final_head_forward(x2, weight, bias, tile_l=128, force_tiled=True))
    assert out2.shape == (B2, num_classes, L2)
    assert jnp.allclose(out2, reference(x2), atol=1e-5, rtol=1e-5)

    print("KERNEL_OK")
</pallas_src>

<mosaic_0001>
module attributes {stable_mosaic.version = 11 : i64} {
  func.func @_final_head_fused_kernel(%arg0: i32, %arg1: memref<2x64x128xf32, #tpu.memory_space<vmem>>, %arg2: memref<21x64xf32, #tpu.memory_space<vmem>>, %arg3: memref<21x1xf32, #tpu.memory_space<vmem>>, %arg4: memref<2x21x128xf32, #tpu.memory_space<vmem>>) attributes {dimension_semantics = [#tpu.dimension_semantics<arbitrary>], iteration_bounds = array<i64: 1>, scalar_prefetch = 0 : i64, scratch_operands = 0 : i64, tpu.core_type = #tpu.core_type<tc>, window_params = [{pipeline_mode = #tpu.pipeline_mode<synchronous>, transform_indices = @transform_0, window_bounds = array<i64: 2, 64, 128>}, {pipeline_mode = #tpu.pipeline_mode<synchronous>, transform_indices = @transform_1, window_bounds = array<i64: 21, 64>}, {pipeline_mode = #tpu.pipeline_mode<synchronous>, transform_indices = @transform_2, window_bounds = array<i64: 21, 1>}, {pipeline_mode = #tpu.pipeline_mode<synchronous>, transform_indices = @transform_3, window_bounds = array<i64: 2, 21, 128>}]} {
    %c0 = arith.constant 0 : index
    %c0_0 = arith.constant 0 : index
    %0 = vector.load %arg2[%c0, %c0_0] : memref<21x64xf32, #tpu.memory_space<vmem>>, vector<21x64xf32>
    %c0_1 = arith.constant 0 : index
    %c0_2 = arith.constant 0 : index
    %1 = vector.load %arg3[%c0_1, %c0_2] : memref<21x1xf32, #tpu.memory_space<vmem>>, vector<21x1xf32>
    %c0_3 = arith.constant 0 : index
    %c0_4 = arith.constant 0 : index
    %c0_5 = arith.constant 0 : index
    %2 = vector.load %arg1[%c0_3, %c0_4, %c0_5] : memref<2x64x128xf32, #tpu.memory_space<vmem>>, vector<1x64x128xf32>
    %3 = vector.shape_cast %2 : vector<1x64x128xf32> to vector<64x128xf32>
    %cst = arith.constant dense<0.000000e+00> : vector<21x128xf32>
    %4 = tpu.matmul %0, %3, %cst {dimension_numbers = #tpu.dot_dimension_numbers<[1], [0], [0], [1], [0, 0, 1, 1], [], []>} : vector<21x64xf32>, vector<64x128xf32>, vector<21x128xf32> -> vector<21x128xf32>
    %5 = vector.broadcast %1 : vector<21x1xf32> to vector<21x128xf32>
    %6 = arith.addf %4, %5 : vector<21x128xf32>
    %c0_6 = arith.constant 0 : index
    %c0_7 = arith.constant 0 : index
    %c0_8 = arith.constant 0 : index
    %7 = vector.load %arg4[%c0_6, %c0_7, %c0_8] : memref<2x21x128xf32, #tpu.memory_space<vmem>>, vector<1x21x128xf32>
    %8 = vector.shape_cast %7 : vector<1x21x128xf32> to vector<21x128xf32>
    %9 = vector.shape_cast %6 : vector<21x128xf32> to vector<1x21x128xf32>
    tpu.vector_store %arg4[%c0_6, %c0_7, %c0_8], %9 {strides = array<i32>} : memref<2x21x128xf32, #tpu.memory_space<vmem>>, vector<1x21x128xf32>,
    %c1 = arith.constant 1 : index
    %c0_9 = arith.constant 0 : index
    %c0_10 = arith.constant 0 : index
    %10 = vector.load %arg1[%c1, %c0_9, %c0_10] : memref<2x64x128xf32, #tpu.memory_space<vmem>>, vector<1x64x128xf32>
    %11 = vector.shape_cast %10 : vector<1x64x128xf32> to vector<64x128xf32>
    %cst_11 = arith.constant dense<0.000000e+00> : vector<21x128xf32>
    %12 = tpu.matmul %0, %11, %cst_11 {dimension_numbers = #tpu.dot_dimension_numbers<[1], [0], [0], [1], [0, 0, 1, 1], [], []>} : vector<21x64xf32>, vector<64x128xf32>, vector<21x128xf32> -> vector<21x128xf32>
    %13 = vector.broadcast %1 : vector<21x1xf32> to vector<21x128xf32>
    %14 = arith.addf %12, %13 : vector<21x128xf32>
    %c1_12 = arith.constant 1 : index
    %c0_13 = arith.constant 0 : index
    %c0_14 = arith.constant 0 : index
    %15 = vector.load %arg4[%c1_12, %c0_13, %c0_14] : memref<2x21x128xf32, #tpu.memory_space<vmem>>, vector<1x21x128xf32>
    %16 = vector.shape_cast %15 : vector<1x21x128xf32> to vector<21x128xf32>
    %17 = vector.shape_cast %14 : vector<21x128xf32> to vector<1x21x128xf32>
    tpu.vector_store %arg4[%c1_12, %c0_13, %c0_14], %17 {strides = array<i32>} : memref<2x21x128xf32, #tpu.memory_space<vmem>>, vector<1x21x128xf32>,
    return
  }
  func.func @transform_0(%arg0: i32) -> (i32, i32, i32) {
    %c0_i32 = arith.constant 0 : i32
    %c0_i32_0 = arith.constant 0 : i32
    %c0_i32_1 = arith.constant 0 : i32
    %c0_i32_2 = arith.constant 0 : i32
    return %c0_i32, %c0_i32_0, %c0_i32_1 : i32, i32, i32
  }
  func.func @transform_1(%arg0: i32) -> (i32, i32) {
    %c0_i32 = arith.constant 0 : i32
    %c0_i32_0 = arith.constant 0 : i32
    %c0_i32_1 = arith.constant 0 : i32
    return %c0_i32, %c0_i32_0 : i32, i32
  }
  func.func @transform_2(%arg0: i32) -> (i32, i32) {
    %c0_i32 = arith.constant 0 : i32
    %c0_i32_0 = arith.constant 0 : i32
    %c0_i32_1 = arith.constant 0 : i32
    return %c0_i32, %c0_i32_0 : i32, i32
  }
  func.func @transform_3(%arg0: i32) -> (i32, i32, i32) {
    %c0_i32 = arith.constant 0 : i32
    %c0_i32_0 = arith.constant 0 : i32
    %c0_i32_1 = arith.constant 0 : i32
    %c0_i32_2 = arith.constant 0 : i32
    return %c0_i32, %c0_i32_0, %c0_i32_1 : i32, i32, i32
  }
}

</mosaic_0001>

<llo_original>
// kernel: tpu_custom_call.1
$region0: #{tpu_custom_call.1}
  #allocation0 [shape = 'u32[]', space=smem, size = 0x4, offset = 0x4, fixed_abs, tag = 'smem constant byte address 0x4 - core index']
  #allocation1 [shape = 'u32[144,128]{1,0:T(1,128)}', space=vmem, size = 0x12000, scoped, tag = 'internal scratch']
  %s0 = inlined_call_operand.hbm [shape: f32[2,64,128], index: 0, kind: input, shape index: {}]
  %s1 = inlined_call_operand.vmem [shape: f32[21,64], index: 1, kind: input, shape index: {}]
  %s2 = inlined_call_operand.vmem [shape: f32[21,1], index: 2, kind: input, shape index: {}]
  %s3 = inlined_call_operand.vmem [shape: f32[2,21,128], index: 3, kind: output, shape index: {}]
  %s4 = sld [smem:[#allocation0]]
  $region26: #{tpu_custom_call.1} parent=0
    _
  %s6 = ssub.s32 1, %s4
  %s7 = scalar_select 0, %s6, %s4
  $region1: #{tpu_custom_call.1} parent=0
    #allocation2 [shape = 'u8[65536]{0}', space=vmem, size = 0x10000, scoped, tag = 'input window, operand 0, single buffered']
    #allocation3 [shape = 's32[1]{0}', space=sflag, size = 0x4, scoped, tag = 'scoped memory for tpu_custom_call.1']
    %8 = vsyncpa [#allocation3], 0
    // Predicated region
    $region2: #{tpu_custom_call.1} parent=1 // pred_check
      _
    $region3: #{tpu_custom_call.1} parent=1 // pred_check_branch
      %10 = sbr.rel (0) target = $region5
    $region4: #{tpu_custom_call.1} parent=1 // pred_region
      %s12 = ssub.s32 2048, 2048
      %13 = vsyncadd [#allocation3], %s12
      %s14 = sshll.u32 [#allocation2], 4
      %s15 = int_to_ptr.vmem [resolvable:$true] %s14
      %20 = dma.hbm_to_vmem [thread:$0]  %s0, 2048, %s15, [#allocation3], 128, 128, 8
    $region5: #{tpu_custom_call.1} parent=1 // pred_fallthru
      _
    // Predicated region
    $region6: #{tpu_custom_call.1} parent=1 // pred_check
      _
    $region7: #{tpu_custom_call.1} parent=1 // pred_check_branch
      %22 = sbr.rel (0) target = $region9
    $region8: #{tpu_custom_call.1} parent=1 // pred_region
      _
    $region9: #{tpu_custom_call.1} parent=1 // pred_fallthru
      _
    // Predicated region
    $region10: #{tpu_custom_call.1} parent=1 // pred_check
      _
    $region11: #{tpu_custom_call.1} parent=1 // pred_check_branch
      %24 = sbr.rel (0) target = $region13
    $region12: #{tpu_custom_call.1} parent=1 // pred_region
      _
    $region13: #{tpu_custom_call.1} parent=1 // pred_fallthru
      _
    // Predicated region
    $region14: #{tpu_custom_call.1} parent=1 // pred_check
      _
    $region15: #{tpu_custom_call.1} parent=1 // pred_check_branch
      %26 = sbr.rel (0) target = $region17
    $region16: #{tpu_custom_call.1} parent=1 // pred_region
      %27 = dma.done [#allocation3], 2048
    $region17: #{tpu_custom_call.1} parent=1 // pred_fallthru
      _
    %v28 = vld [vmem:[%s1] sm:$0xff]
    %v29 = vld [vmem:[%s1 + $0x8] sm:$0xff]
    %v30 = vld [vmem:[%s1 + $0x10] sm:$0x1f]
    %v31 = vld [vmem:[%s2] sm:$0xff]
    %v32 = vld [vmem:[%s2 + $0x8] sm:$0xff]
    %v33 = vld [vmem:[%s2 + $0x10] sm:$0x1f]
    %v34 = vld [vmem:[#allocation2] sm:$0xff]
    %v35 = vld [vmem:[#allocation2 + $0x8] sm:$0xff]
    %v36 = vld [vmem:[#allocation2 + $0x10] sm:$0xff]
    %v37 = vld [vmem:[#allocation2 + $0x18] sm:$0xff]
    %v38 = vld [vmem:[#allocation2 + $0x20] sm:$0xff]
    %v39 = vld [vmem:[#allocation2 + $0x28] sm:$0xff]
    %v40 = vld [vmem:[#allocation2 + $0x30] sm:$0xff]
    %v41 = vld [vmem:[#allocation2 + $0x38] sm:$0xff]
    %43 = vset.pattern.permute.xlu0 0
    %44 = vperm.xlu0 %43, %v31
    %v45 = vpop.permute.xlu0 %44
    %48 = vset.pattern.permute.xlu0 0
    %49 = vperm.xlu0 %48, %v32
    %v50 = vpop.permute.xlu0 %49
    %53 = vset.pattern.permute.xlu0 0
    %54 = vperm.xlu0 %53, %v33
    %v55 = vpop.permute.xlu0 %54
    %vm57 = vcmask 523264
    %v59 = vsel %vm57, %v28, 0
    %v62 = vsel %vm57, %v29, 0
    %v65 = vsel %vm57, %v30, 0
    %67 = vmatprep.subr.mxu0 0.0
    %68 = vmatpush1.msra.mxu0 %v34
    %69 = vmatprep.subr.mxu0 0.0
    %70 = vmatpush1.msra.mxu0 %v35
    %71 = vmatprep.subr.mxu0 0.0
    %72 = vmatpush1.msra.mxu0 %v36
    %73 = vmatprep.subr.mxu0 0.0
    %74 = vmatpush1.msra.mxu0 %v37
    %75 = vmatprep.subr.mxu0 0.0
    %76 = vmatpush1.msra.mxu0 %v38
    %77 = vmatprep.subr.mxu0 0.0
    %78 = vmatpush1.msra.mxu0 %v39
    %79 = vmatprep.subr.mxu0 0.0
    %80 = vmatpush1.msra.mxu0 %v40
    %81 = vmatprep.subr.mxu0 0.0
    %82 = vmatpush1.msra.mxu0 %v41
    %83 = vmatprep.subr.mxu0 0.0
    %84 = vmatpush1.msra.mxu0 0.0
    %85 = vmatprep.subr.mxu0 0.0
    %86 = vmatpush1.msra.mxu0 0.0
    %87 = vmatprep.subr.mxu0 0.0
    %88 = vmatpush1.msra.mxu0 0.0
    %89 = vmatprep.subr.mxu0 0.0
    %90 = vmatpush1.msra.mxu0 0.0
    %91 = vmatprep.subr.mxu0 0.0
    %92 = vmatpush1.msra.mxu0 0.0
    %93 = vmatprep.subr.mxu0 0.0
    %94 = vmatpush1.msra.mxu0 0.0
    %95 = vmatprep.subr.mxu0 0.0
    %96 = vmatpush1.msra.mxu0 0.0
    %97 = vmatprep.subr.mxu0 0.0
    %98 = vmatpush1.msra.mxu0 0.0
    %99 = vmatprep.subr.mxu0 0.0
    %100 = vmatpush1.msra.mxu0 0.0
    %101 = vmatprep.subr.mxu0 0.0
    %102 = vmatpush1.msra.mxu0 0.0
    %103 = vmatprep.subr.mxu0 0.0
    %104 = vmatpush1.msra.mxu0 0.0
    %105 = vmatprep.subr.mxu0 0.0
    %106 = vmatpush1.msra.mxu0 0.0
    %107 = vmatprep.subr.mxu0 0.0
    %108 = vmatpush1.msra.mxu0 0.0
    %109 = vmatprep.subr.mxu0 0.0
    %110 = vmatpush1.msra.mxu0 0.0
    %111 = vmatprep.subr.mxu0 0.0
    %112 = vmatpush1.msra.mxu0 0.0
    %113 = vmatprep.subr.mxu0 0.0
    %114 = vmatpush1.msra.mxu0 0.0
    %115 = vmatprep.subr.mxu0 0.0
    %116 = vmatpush1.msra.mxu0 0.0
    %117 = vmatprep.subr.mxu0 0.0
    %118 = vmatpush1.msra.mxu0 0.0
    %119 = vmatprep.subr.mxu0 0.0
    %120 = vmatpush1.msra.mxu0 0.0
    %121 = vmatprep.subr.mxu0 0.0
    %122 = vmatpush1.msra.mxu0 0.0
    %123 = vmatprep.subr.mxu0 0.0
    %124 = vmatpush1.msra.mxu0 0.0
    %125 = vmatprep.subr.mxu0 0.0
    %126 = vmatpush1.msra.mxu0 0.0
    %127 = vmatprep.subr.mxu0 0.0
    %128 = vmatpush1.msra.mxu0 0.0
    %129 = vmatprep.subr.mxu0 0.0
    %130 = vmatpush1.msra.mxu0 0.0
    %131 = vmatprep.mubr.f32.mxu0 0.0
    %132 = vmatmul.mubr.f32.gmra.mrb[0].mxu0 %v59
    %v133 = vpop.f32.mrb[0].mxu0
    %v134 = vadd.f32 %v45, %v133
    %v135 = vpop.f32.mrb[0].mxu0
    %136 = vmatprep.mubr.f32.mxu0 0.0
    %137 = vmatmul.mubr.f32.gmra.mrb[0].mxu0 %v62
    %v138 = vpop.f32.mrb[0].mxu0
    %v139 = vadd.f32 %v50, %v138
    %v140 = vpop.f32.mrb[0].mxu0
    %141 = vmatprep.mubr.f32.mxu0 0.0
    %142 = vmatmul.mubr.f32.gmra.mrb[0].mxu0 %v65
    %v143 = vpop.f32.mrb[0].mxu0
    %v144 = vadd.f32 %v55, %v143
    %v145 = vpop.f32.mrb[0].mxu0
    %146 = vdwg.mxu0
    %147 = vst [vmem:[%s3] sm:$0xff] %v134
    %148 = vst [vmem:[%s3 + $0x8] sm:$0xff] %v139
    %149 = vst [vmem:[%s3 + $0x10] sm:$0x1f] %v144
    %s150 = scalar_lea.vmem [#allocation2], 64
    %v151 = vld [vmem:[%s150] sm:$0xff]
    %v152 = vld [vmem:[%s150 + $0x8] sm:$0xff]
    %v153 = vld [vmem:[%s150 + $0x10] sm:$0xff]
    %v154 = vld [vmem:[%s150 + $0x18] sm:$0xff]
    %v155 = vld [vmem:[%s150 + $0x20] sm:$0xff]
    %v156 = vld [vmem:[%s150 + $0x28] sm:$0xff]
    %v157 = vld [vmem:[%s150 + $0x30] sm:$0xff]
    %v158 = vld [vmem:[%s150 + $0x38] sm:$0xff]
    %159 = vmatprep.subr.mxu0 0.0
    %160 = vmatpush1.msra.mxu0 %v151
    %161 = vmatprep.subr.mxu0 0.0
    %162 = vmatpush1.msra.mxu0 %v152
    %163 = vmatprep.subr.mxu0 0.0
    %164 = vmatpush1.msra.mxu0 %v153
    %165 = vmatprep.subr.mxu0 0.0
    %166 = vmatpush1.msra.mxu0 %v154
    %167 = vmatprep.subr.mxu0 0.0
    %168 = vmatpush1.msra.mxu0 %v155
    %169 = vmatprep.subr.mxu0 0.0
    %170 = vmatpush1.msra.mxu0 %v156
    %171 = vmatprep.subr.mxu0 0.0
    %172 = vmatpush1.msra.mxu0 %v157
    %173 = vmatprep.subr.mxu0 0.0
    %174 = vmatpush1.msra.mxu0 %v158
    %175 = vmatprep.subr.mxu0 0.0
    %176 = vmatpush1.msra.mxu0 0.0
    %177 = vmatprep.subr.mxu0 0.0
    %178 = vmatpush1.msra.mxu0 0.0
    %179 = vmatprep.subr.mxu0 0.0
    %180 = vmatpush1.msra.mxu0 0.0
    %181 = vmatprep.subr.mxu0 0.0
    %182 = vmatpush1.msra.mxu0 0.0
    %183 = vmatprep.subr.mxu0 0.0
    %184 = vmatpush1.msra.mxu0 0.0
    %185 = vmatprep.subr.mxu0 0.0
    %186 = vmatpush1.msra.mxu0 0.0
    %187 = vmatprep.subr.mxu0 0.0
    %188 = vmatpush1.msra.mxu0 0.0
    %189 = vmatprep.subr.mxu0 0.0
    %190 = vmatpush1.msra.mxu0 0.0
    %191 = vmatprep.subr.mxu0 0.0
    %192 = vmatpush1.msra.mxu0 0.0
    %193 = vmatprep.subr.mxu0 0.0
    %194 = vmatpush1.msra.mxu0 0.0
    %195 = vmatprep.subr.mxu0 0.0
    %196 = vmatpush1.msra.mxu0 0.0
    %197 = vmatprep.subr.mxu0 0.0
    %198 = vmatpush1.msra.mxu0 0.0
    %199 = vmatprep.subr.mxu0 0.0
    %200 = vmatpush1.msra.mxu0 0.0
    %201 = vmatprep.subr.mxu0 0.0
    %202 = vmatpush1.msra.mxu0 0.0
    %203 = vmatprep.subr.mxu0 0.0
    %204 = vmatpush1.msra.mxu0 0.0
    %205 = vmatprep.subr.mxu0 0.0
    %206 = vmatpush1.msra.mxu0 0.0
    %207 = vmatprep.subr.mxu0 0.0
    %208 = vmatpush1.msra.mxu0 0.0
    %209 = vmatprep.subr.mxu0 0.0
    %210 = vmatpush1.msra.mxu0 0.0
    %211 = vmatprep.subr.mxu0 0.0
    %212 = vmatpush1.msra.mxu0 0.0
    %213 = vmatprep.subr.mxu0 0.0
    %214 = vmatpush1.msra.mxu0 0.0
    %215 = vmatprep.subr.mxu0 0.0
    %216 = vmatpush1.msra.mxu0 0.0
    %217 = vmatprep.subr.mxu0 0.0
    %218 = vmatpush1.msra.mxu0 0.0
    %219 = vmatprep.subr.mxu0 0.0
    %220 = vmatpush1.msra.mxu0 0.0
    %221 = vmatprep.subr.mxu0 0.0
    %222 = vmatpush1.msra.mxu0 0.0
    %223 = vmatprep.mubr.f32.mxu0 0.0
    %224 = vmatmul.mubr.f32.gmra.mrb[0].mxu0 %v59
    %v225 = vpop.f32.mrb[0].mxu0
    %v226 = vadd.f32 %v45, %v225
    %v227 = vpop.f32.mrb[0].mxu0
    %228 = vmatprep.mubr.f32.mxu0 0.0
    %229 = vmatmul.mubr.f32.gmra.mrb[0].mxu0 %v62
    %v230 = vpop.f32.mrb[0].mxu0
    %v231 = vadd.f32 %v50, %v230
    %v232 = vpop.f32.mrb[0].mxu0
    %233 = vmatprep.mubr.f32.mxu0 0.0
    %234 = vmatmul.mubr.f32.gmra.mrb[0].mxu0 %v65
    %v235 = vpop.f32.mrb[0].mxu0
    %v236 = vadd.f32 %v55, %v235
    %v237 = vpop.f32.mrb[0].mxu0
    %238 = vdwg.mxu0
    %s239 = scalar_lea.vmem %s3, 24
    %240 = vst [vmem:[%s239] sm:$0xff] %v226
    %241 = vst [vmem:[%s239 + $0x8] sm:$0xff] %v231
    %242 = vst [vmem:[%s239 + $0x10] sm:$0x1f] %v236
    // Predicated region
    $region18: #{tpu_custom_call.1} parent=1 // pred_check
      _
    $region19: #{tpu_custom_call.1} parent=1 // pred_check_branch
      %244 = sbr.rel (0) target = $region21
    $region20: #{tpu_custom_call.1} parent=1 // pred_region
      _
    $region21: #{tpu_custom_call.1} parent=1 // pred_fallthru
      _
    // Predicated region
    $region22: #{tpu_custom_call.1} parent=1 // pred_check
      _
    $region23: #{tpu_custom_call.1} parent=1 // pred_check_branch
      %246 = sbr.rel (0) target = $region25
    $region24: #{tpu_custom_call.1} parent=1 // pred_region
      _
    $region25: #{tpu_custom_call.1} parent=1 // pred_fallthru
      _
    %247 = vsyncpa [#allocation3], 1

</llo_original>
